<compile_context>
chip_gen: v5e
topology: v5e:2x2
jax: 0.10.0
libtpu: 0.0.40
codegen_flags: <defaults>
</compile_context>

<pallas_src>
import functools

import jax
import jax.numpy as jnp
from jax import lax
from jax.experimental import pallas as pl
from jax.experimental.pallas import tpu as pltpu


def _round_up(x, m):
    return (x + m - 1) // m * m


def _cdiv(a, b):
    return (a + b - 1) // b


def fusion_head_kernel(audio_ref, frames_ref, w1a_ref, w1b_ref, b1_ref,
                       w2_ref, b2_ref, out_ref, vsum_ref,
                       *, inv_num_frames, num_frames, tf):
    """Streamed frame mean-pool -> split-K Linear -> ReLU -> Linear.

    Grid = (batch tiles "parallel", frame tiles "arbitrary"/reduction).

    audio_ref : [TB, D]      bf16 audio embeddings (batch tile)
    frames_ref: [TB, TF, D]  bf16 per-frame image embeddings (batch x frame tile)
    w1a_ref   : [D, H]       bf16  classification_head[0].weight^T[:D]   (audio half)
    w1b_ref   : [D, H]       bf16  classification_head[0].weight^T[D:]   (video half)
    b1_ref    : [1, H]       f32
    w2_ref    : [H, Lp]      bf16  classification_head[3].weight^T, lane-padded
    b2_ref    : [1, Lp]      f32
    out_ref   : [TB, Lp]     f32 lane-dense padded logits
    vsum_ref  : [TB, D]      f32 VMEM scratch, partial frame sums
    """
    f = pl.program_id(1)

    @pl.when(f == 0)
    def _():
        vsum_ref[...] = jnp.zeros_like(vsum_ref)

    # Partial frame sum for this frame tile (f32 accumulate); the next tile's
    # DMA overlaps this VPU pass.
    frames = frames_ref[...].astype(jnp.float32)            # [TB, TF, D]
    if num_frames % tf != 0:  # static: only emitted when the last tile is ragged
        fidx = lax.broadcasted_iota(jnp.int32, frames.shape, 1)
        frames = jnp.where(fidx < (num_frames - f * tf), frames, 0.0)
    vsum_ref[...] += jnp.sum(frames, axis=1)

    @pl.when(f == pl.num_programs(1) - 1)
    def _():
        audio = audio_ref[...]                                        # [TB, D] bf16
        video = (vsum_ref[...] * inv_num_frames).astype(audio.dtype)  # mul, no div
        # fusion = cat([audio, video], 1) @ W1 computed as two split-K MXU dots
        # (no lane-unaligned concatenate when D % 128 != 0); f32 accumulation.
        h = (jnp.dot(audio, w1a_ref[...], preferred_element_type=jnp.float32)
             + jnp.dot(video, w1b_ref[...], preferred_element_type=jnp.float32)
             + b1_ref[...])
        h = jnp.maximum(h, 0.0)        # Dropout is identity in eval mode; ReLU.
        out_ref[...] = (jnp.dot(h.astype(w2_ref.dtype), w2_ref[...],
                                preferred_element_type=jnp.float32)
                        + b2_ref[...])                                 # [TB, Lp]


def init_params(key, embed_dim, hidden, label_number):
    """Deterministic nn.Linear-style init (uniform(-1/sqrt(fan_in), ...))."""
    fusion_dim = 2 * embed_dim
    k1, k2, k3, k4 = jax.random.split(key, 4)
    lim1 = 1.0 / jnp.sqrt(fusion_dim)
    lim2 = 1.0 / jnp.sqrt(hidden)
    w1 = jax.random.uniform(k1, (fusion_dim, hidden), jnp.float32, -lim1, lim1)
    b1 = jax.random.uniform(k2, (hidden,), jnp.float32, -lim1, lim1)
    w2 = jax.random.uniform(k3, (hidden, label_number), jnp.float32, -lim2, lim2)
    b2 = jax.random.uniform(k4, (label_number,), jnp.float32, -lim2, lim2)
    return w1, b1, w2, b2


def pack_params(w1, b1, w2, b2, compute_dtype=jnp.bfloat16):
    """One-time packing: split W1, bf16 weights, [1,.] f32 biases, 128-lane pad."""
    d2, hidden = w1.shape
    embed_dim = d2 // 2
    label_number = w2.shape[1]
    lp = _round_up(max(label_number, 128), 128)
    w2p = jnp.zeros((hidden, lp), compute_dtype).at[:, :label_number].set(
        w2.astype(compute_dtype))
    b2p = jnp.zeros((1, lp), jnp.float32).at[:, :label_number].set(b2)
    return {
        "w1a": w1[:embed_dim].astype(compute_dtype),   # audio half of W1
        "w1b": w1[embed_dim:].astype(compute_dtype),   # video half of W1
        "b1": b1.reshape(1, hidden).astype(jnp.float32),
        "w2": w2p,
        "b2": b2p,
        "label_number": label_number,
        "compute_dtype": compute_dtype,
    }


def _vmem_limit_bytes():
    # Explicit scoped-VMEM limit (defaults of 16/32 MiB are too small for
    # roofline-sized frame tiles): ~3/4 of physical, capped at 100 MiB
    # -> ~96-100 MiB on v5e/v6e (128 MiB phys), ~48 MiB on v7x (64 MiB phys).
    try:
        phys = pltpu.get_tpu_info().vmem_capacity_bytes
    except Exception:
        phys = 64 * 1024 * 1024
    return int(min(100 * 1024 * 1024, phys * 3 // 4))


def fusion_model_forward(audio_features, image_features, batch_length, packed):
    """audio_features: [B, D]; image_features: [B*F, D] (AudioCLIP outputs)."""
    D = audio_features.shape[-1]
    cdt = packed["compute_dtype"]
    frames = image_features.reshape(batch_length, -1, D).astype(cdt)  # [B, F, D]
    audio = audio_features.astype(cdt)
    B, F, _ = frames.shape
    w1a, w1b, b1 = packed["w1a"], packed["w1b"], packed["b1"]
    w2, b2, L = packed["w2"], packed["b2"], packed["label_number"]
    H = w1a.shape[1]
    Lp = w2.shape[1]
    fsize = jnp.dtype(cdt).itemsize

    # ---- Batch tiling: no wrapper-side padding of the dominant frames tensor.
    # Ragged last batch tiles rely on Pallas boundary handling (OOB rows read
    # garbage but their logits are never written back).  TB is either the full
    # (tiny) batch, or a multiple of 8 chosen so nb >= 2 (v7x megacore).
    if B <= 8:
        TB = B
    else:
        TB = min(128, _round_up(_cdiv(B, 2), 8))
    nb = _cdiv(B, TB)

    # ---- Frame tiling (reduction axis): VMEM-budget driven.  Target ~4 MiB
    # per frames block (x2 pipeline buffers) so each grid step amortizes the
    # ~0.35us step overhead yet stays well inside v7x's 64 MiB VMEM even at
    # real AudioCLIP D=1024.
    budget_per_buf = 4 * 1024 * 1024
    tf_cap = max(8, (budget_per_buf // max(1, TB * D * fsize)) // 8 * 8)
    if F <= tf_cap:
        TF = F          # full frame extent in one block (valid for any F)
    else:
        TF = tf_cap     # multiple of 8; ragged last tile is masked in-kernel
    nf = _cdiv(F, TF)

    kernel = functools.partial(fusion_head_kernel, inv_num_frames=1.0 / F,
                               num_frames=F, tf=TF)

    # Triple-buffer the frames stream only when tiles are forced to stay small.
    frames_block_bytes = TB * TF * D * fsize
    if nf >= 3 and frames_block_bytes < 2 * 1024 * 1024:
        frames_spec = pl.BlockSpec((TB, TF, D), lambda i, f: (i, f, 0),
                                   pipeline_mode=pl.Buffered(3))
    else:
        frames_spec = pl.BlockSpec((TB, TF, D), lambda i, f: (i, f, 0))

    weight_bytes = (2 * D * H + H * Lp) * fsize + (H + Lp) * 4
    cost = pl.CostEstimate(
        flops=2 * B * (2 * D * H + H * Lp),
        transcendentals=0,
        bytes_accessed=(B * F * D + B * D) * fsize + weight_bytes + B * Lp * 4,
    )

    out = pl.pallas_call(
        kernel,
        out_shape=jax.ShapeDtypeStruct((B, Lp), jnp.float32),
        grid_spec=pltpu.PrefetchScalarGridSpec(
            num_scalar_prefetch=0,
            grid=(nb, nf),
            in_specs=[
                pl.BlockSpec((TB, D), lambda i, f: (i, 0)),      # audio
                frames_spec,                                     # frames (streamed)
                pl.BlockSpec((D, H), lambda i, f: (0, 0)),       # W1 audio half
                pl.BlockSpec((D, H), lambda i, f: (0, 0)),       # W1 video half
                pl.BlockSpec((1, H), lambda i, f: (0, 0)),       # b1
                pl.BlockSpec((H, Lp), lambda i, f: (0, 0)),      # W2 (resident)
                pl.BlockSpec((1, Lp), lambda i, f: (0, 0)),      # b2
            ],
            out_specs=pl.BlockSpec((TB, Lp), lambda i, f: (i, 0)),
            scratch_shapes=[pltpu.VMEM((TB, D), jnp.float32)],
        ),
        compiler_params=pltpu.CompilerParams(
            dimension_semantics=("parallel", "arbitrary"),
            vmem_limit_bytes=_vmem_limit_bytes()),
        cost_estimate=cost,
    )(audio, frames, w1a, w1b, b1, w2, b2)

    return out[:, :L]


def reference_forward_f32(audio_features, image_features, batch_length, params):
    """Plain-JAX f32 reference matching the PyTorch forward semantics."""
    w1, b1, w2, b2 = params
    D = audio_features.shape[-1]
    frames = image_features.reshape(batch_length, -1, D)
    video = frames.sum(axis=1) / frames.shape[1]
    fusion = jnp.concatenate([audio_features, video], axis=1)
    h = jnp.maximum(fusion @ w1 + b1, 0.0)   # Dropout == identity (eval)
    return h @ w2 + b2


def reference_forward_matched(audio_features, image_features, batch_length, packed):
    """Plain-JAX reference using the same bf16 casts / f32 accumulation."""
    cdt = packed["compute_dtype"]
    D = audio_features.shape[-1]
    frames = image_features.reshape(batch_length, -1, D).astype(cdt)
    F = frames.shape[1]
    video = (frames.astype(jnp.float32).sum(axis=1) * (1.0 / F)).astype(cdt)
    audio = audio_features.astype(cdt)
    h = (jnp.dot(audio, packed["w1a"], preferred_element_type=jnp.float32)
         + jnp.dot(video, packed["w1b"], preferred_element_type=jnp.float32)
         + packed["b1"])
    h = jnp.maximum(h, 0.0)
    out = (jnp.dot(h.astype(cdt), packed["w2"],
                   preferred_element_type=jnp.float32) + packed["b2"])
    return out[:, :packed["label_number"]]


if __name__ == "__main__":
    # Small, module-consistent shapes.
    B = 2            # batch_length
    F = 4            # frames per video clip
    D = 32           # audioclip.embed_dim  (audio == vision embed dim)
    H = 256          # classification_head hidden dim (fixed in the module)
    L = 8            # args.label_number

    key = jax.random.PRNGKey(0)
    k_a, k_v, k_p = jax.random.split(key, 3)

    # Embeddings that the AudioCLIP encoders would emit.
    audio_features = jax.random.normal(k_a, (B, D), jnp.float32)
    image_features = jax.random.normal(k_v, (B * F, D), jnp.float32)

    raw_params = init_params(k_p, D, H, L)
    packed = pack_params(*raw_params)        # one-time parameter packing (bf16)

    out = fusion_model_forward(audio_features, image_features, B, packed)
    out = jax.block_until_ready(out)
    assert out.shape == (B, L)

    ref_match = reference_forward_matched(audio_features, image_features, B, packed)
    ref_f32 = reference_forward_f32(audio_features, image_features, B, raw_params)
    assert jnp.allclose(out, ref_match, atol=2e-3, rtol=2e-3), (out, ref_match)
    assert jnp.allclose(out, ref_f32, atol=5e-2, rtol=5e-2), (out, ref_f32)

    print("KERNEL_OK")
</pallas_src>

<mosaic_0001>
module attributes {stable_mosaic.version = 11 : i64} {
  func.func @fusion_head_kernel(%arg0: i32, %arg1: i32, %arg2: memref<2x32xbf16, #tpu.memory_space<vmem>>, %arg3: memref<2x4x32xbf16, #tpu.memory_space<vmem>>, %arg4: memref<32x256xbf16, #tpu.memory_space<vmem>>, %arg5: memref<32x256xbf16, #tpu.memory_space<vmem>>, %arg6: memref<1x256xf32, #tpu.memory_space<vmem>>, %arg7: memref<256x128xbf16, #tpu.memory_space<vmem>>, %arg8: memref<1x128xf32, #tpu.memory_space<vmem>>, %arg9: memref<2x128xf32, #tpu.memory_space<vmem>>, %arg10: memref<2x32xf32, #tpu.memory_space<vmem>>) attributes {dimension_semantics = [#tpu.dimension_semantics<parallel>, #tpu.dimension_semantics<arbitrary>], iteration_bounds = array<i64: 1, 1>, scalar_prefetch = 0 : i64, scratch_operands = 1 : i64, tpu.core_type = #tpu.core_type<tc>, window_params = [{transform_indices = @transform_0, window_bounds = array<i64: 2, 32>}, {transform_indices = @transform_1, window_bounds = array<i64: 2, 4, 32>}, {pipeline_mode = #tpu.pipeline_mode<synchronous>, transform_indices = @transform_2, window_bounds = array<i64: 32, 256>}, {pipeline_mode = #tpu.pipeline_mode<synchronous>, transform_indices = @transform_3, window_bounds = array<i64: 32, 256>}, {pipeline_mode = #tpu.pipeline_mode<synchronous>, transform_indices = @transform_4, window_bounds = array<i64: 1, 256>}, {pipeline_mode = #tpu.pipeline_mode<synchronous>, transform_indices = @transform_5, window_bounds = array<i64: 256, 128>}, {pipeline_mode = #tpu.pipeline_mode<synchronous>, transform_indices = @transform_6, window_bounds = array<i64: 1, 128>}, {transform_indices = @transform_7, window_bounds = array<i64: 2, 128>}]} {
    %c0_i32 = arith.constant 0 : i32
    %0 = arith.cmpi eq, %arg1, %c0_i32 : i32
    %1 = arith.extui %0 : i1 to i32
    %c0_i32_0 = arith.constant 0 : i32
    %2 = arith.cmpi ne, %1, %c0_i32_0 : i32
    scf.if %2 {
      %cst_9 = arith.constant 0.000000e+00 : f32
      %12 = vector.broadcast %cst_9 : f32 to vector<2x32xf32>
      %c0_10 = arith.constant 0 : index
      %c0_11 = arith.constant 0 : index
      %13 = vector.load %arg10[%c0_10, %c0_11] : memref<2x32xf32, #tpu.memory_space<vmem>>, vector<2x32xf32>
      tpu.vector_store %arg10[%c0_10, %c0_11], %12 {strides = array<i32>} : memref<2x32xf32, #tpu.memory_space<vmem>>, vector<2x32xf32>,
    } else {
    }
    %c0 = arith.constant 0 : index
    %c0_1 = arith.constant 0 : index
    %c0_2 = arith.constant 0 : index
    %3 = vector.load %arg3[%c0, %c0_1, %c0_2] : memref<2x4x32xbf16, #tpu.memory_space<vmem>>, vector<2x4x32xbf16>
    %4 = arith.extf %3 : vector<2x4x32xbf16> to vector<2x4x32xf32>
    %c0_3 = arith.constant 0 : index
    %c0_4 = arith.constant 0 : index
    %5 = vector.load %arg10[%c0_3, %c0_4] : memref<2x32xf32, #tpu.memory_space<vmem>>, vector<2x32xf32>
    %cst = arith.constant dense<0.000000e+00> : vector<2x32xf32>
    %6 = vector.multi_reduction <add>, %4, %cst [1] : vector<2x4x32xf32> to vector<2x32xf32>
    %7 = arith.addf %5, %6 : vector<2x32xf32>
    %c0_5 = arith.constant 0 : index
    %c0_6 = arith.constant 0 : index
    %8 = vector.load %arg10[%c0_5, %c0_6] : memref<2x32xf32, #tpu.memory_space<vmem>>, vector<2x32xf32>
    tpu.vector_store %arg10[%c0_5, %c0_6], %7 {strides = array<i32>} : memref<2x32xf32, #tpu.memory_space<vmem>>, vector<2x32xf32>,
    %c0_i32_7 = arith.constant 0 : i32
    %9 = arith.cmpi eq, %arg1, %c0_i32_7 : i32
    %10 = arith.extui %9 : i1 to i32
    %c0_i32_8 = arith.constant 0 : i32
    %11 = arith.cmpi ne, %10, %c0_i32_8 : i32
    scf.if %11 {
      %c0_9 = arith.constant 0 : index
      %c0_10 = arith.constant 0 : index
      %12 = vector.load %arg2[%c0_9, %c0_10] : memref<2x32xbf16, #tpu.memory_space<vmem>>, vector<2x32xbf16>
      %c0_11 = arith.constant 0 : index
      %c0_12 = arith.constant 0 : index
      %13 = vector.load %arg10[%c0_11, %c0_12] : memref<2x32xf32, #tpu.memory_space<vmem>>, vector<2x32xf32>
      %cst_13 = arith.constant 2.500000e-01 : f32
      %14 = vector.broadcast %cst_13 : f32 to vector<2x32xf32>
      %15 = arith.mulf %13, %14 : vector<2x32xf32>
      %16 = arith.truncf %15 : vector<2x32xf32> to vector<2x32xbf16>
      %c0_14 = arith.constant 0 : index
      %c0_15 = arith.constant 0 : index
      %17 = vector.load %arg4[%c0_14, %c0_15] : memref<32x256xbf16, #tpu.memory_space<vmem>>, vector<32x256xbf16>
      %cst_16 = arith.constant dense<0.000000e+00> : vector<2x256xf32>
      %18 = tpu.matmul %12, %17, %cst_16 {dimension_numbers = #tpu.dot_dimension_numbers<[1], [0], [0], [1], [0, 0, 1, 1], [], []>} : vector<2x32xbf16>, vector<32x256xbf16>, vector<2x256xf32> -> vector<2x256xf32>
      %c0_17 = arith.constant 0 : index
      %c0_18 = arith.constant 0 : index
      %19 = vector.load %arg5[%c0_17, %c0_18] : memref<32x256xbf16, #tpu.memory_space<vmem>>, vector<32x256xbf16>
      %cst_19 = arith.constant dense<0.000000e+00> : vector<2x256xf32>
      %20 = tpu.matmul %16, %19, %cst_19 {dimension_numbers = #tpu.dot_dimension_numbers<[1], [0], [0], [1], [0, 0, 1, 1], [], []>} : vector<2x32xbf16>, vector<32x256xbf16>, vector<2x256xf32> -> vector<2x256xf32>
      %21 = arith.addf %18, %20 : vector<2x256xf32>
      %c0_20 = arith.constant 0 : index
      %c0_21 = arith.constant 0 : index
      %22 = vector.load %arg6[%c0_20, %c0_21] : memref<1x256xf32, #tpu.memory_space<vmem>>, vector<1x256xf32>
      %23 = vector.broadcast %22 : vector<1x256xf32> to vector<2x256xf32>
      %24 = arith.addf %21, %23 : vector<2x256xf32>
      %cst_22 = arith.constant 0.000000e+00 : f32
      %25 = vector.broadcast %cst_22 : f32 to vector<2x256xf32>
      %26 = arith.maximumf %24, %25 : vector<2x256xf32>
      %27 = arith.truncf %26 : vector<2x256xf32> to vector<2x256xbf16>
      %c0_23 = arith.constant 0 : index
      %c0_24 = arith.constant 0 : index
      %28 = vector.load %arg7[%c0_23, %c0_24] : memref<256x128xbf16, #tpu.memory_space<vmem>>, vector<256x128xbf16>
      %cst_25 = arith.constant dense<0.000000e+00> : vector<2x128xf32>
      %29 = tpu.matmul %27, %28, %cst_25 {dimension_numbers = #tpu.dot_dimension_numbers<[1], [0], [0], [1], [0, 0, 1, 1], [], []>} : vector<2x256xbf16>, vector<256x128xbf16>, vector<2x128xf32> -> vector<2x128xf32>
      %c0_26 = arith.constant 0 : index
      %c0_27 = arith.constant 0 : index
      %30 = vector.load %arg8[%c0_26, %c0_27] : memref<1x128xf32, #tpu.memory_space<vmem>>, vector<1x128xf32>
      %31 = vector.broadcast %30 : vector<1x128xf32> to vector<2x128xf32>
      %32 = arith.addf %29, %31 : vector<2x128xf32>
      %c0_28 = arith.constant 0 : index
      %c0_29 = arith.constant 0 : index
      %33 = vector.load %arg9[%c0_28, %c0_29] : memref<2x128xf32, #tpu.memory_space<vmem>>, vector<2x128xf32>
      tpu.vector_store %arg9[%c0_28, %c0_29], %32 {strides = array<i32>} : memref<2x128xf32, #tpu.memory_space<vmem>>, vector<2x128xf32>,
    } else {
    }
    return
  }
  func.func @transform_0(%arg0: i32, %arg1: i32) -> (i32, i32) {
    %c0_i32 = arith.constant 0 : i32
    %c0_i32_0 = arith.constant 0 : i32
    return %arg0, %c0_i32 : i32, i32
  }
  func.func @transform_1(%arg0: i32, %arg1: i32) -> (i32, i32, i32) {
    %c0_i32 = arith.constant 0 : i32
    %c0_i32_0 = arith.constant 0 : i32
    return %arg0, %arg1, %c0_i32 : i32, i32, i32
  }
  func.func @transform_2(%arg0: i32, %arg1: i32) -> (i32, i32) {
    %c0_i32 = arith.constant 0 : i32
    %c0_i32_0 = arith.constant 0 : i32
    %c0_i32_1 = arith.constant 0 : i32
    return %c0_i32, %c0_i32_0 : i32, i32
  }
  func.func @transform_3(%arg0: i32, %arg1: i32) -> (i32, i32) {
    %c0_i32 = arith.constant 0 : i32
    %c0_i32_0 = arith.constant 0 : i32
    %c0_i32_1 = arith.constant 0 : i32
    return %c0_i32, %c0_i32_0 : i32, i32
  }
  func.func @transform_4(%arg0: i32, %arg1: i32) -> (i32, i32) {
    %c0_i32 = arith.constant 0 : i32
    %c0_i32_0 = arith.constant 0 : i32
    %c0_i32_1 = arith.constant 0 : i32
    return %c0_i32, %c0_i32_0 : i32, i32
  }
  func.func @transform_5(%arg0: i32, %arg1: i32) -> (i32, i32) {
    %c0_i32 = arith.constant 0 : i32
    %c0_i32_0 = arith.constant 0 : i32
    %c0_i32_1 = arith.constant 0 : i32
    return %c0_i32, %c0_i32_0 : i32, i32
  }
  func.func @transform_6(%arg0: i32, %arg1: i32) -> (i32, i32) {
    %c0_i32 = arith.constant 0 : i32
    %c0_i32_0 = arith.constant 0 : i32
    %c0_i32_1 = arith.constant 0 : i32
    return %c0_i32, %c0_i32_0 : i32, i32
  }
  func.func @transform_7(%arg0: i32, %arg1: i32) -> (i32, i32) {
    %c0_i32 = arith.constant 0 : i32
    %c0_i32_0 = arith.constant 0 : i32
    return %arg0, %c0_i32 : i32, i32
  }
}

</mosaic_0001>

<llo_original>
// kernel: tpu_custom_call.1
$region0: #{tpu_custom_call.1}
  #allocation0 [shape = 'u32[]', space=smem, size = 0x4, offset = 0x4, fixed_abs, tag = 'smem constant byte address 0x4 - core index']
  #allocation1 [shape = 'u32[72,128]{1,0:T(1,128)}', space=vmem, size = 0x9000, scoped, tag = 'internal scratch']
  #allocation2 [shape = 'f32[2,32]{1,0:T(2,128)}', space=vmem, size = 0x400, scoped, tag = 'scratch operand']
  %s0 = inlined_call_operand.hbm [shape: bf16[2,32], index: 0, kind: input, shape index: {}]
  %s1 = inlined_call_operand.hbm [shape: bf16[2,4,32], index: 1, kind: input, shape index: {}]
  %s2 = inlined_call_operand.hbm [shape: bf16[32,256], index: 2, kind: input, shape index: {}]
  %s3 = inlined_call_operand.hbm [shape: bf16[32,256], index: 3, kind: input, shape index: {}]
  %s4 = inlined_call_operand.vmem [shape: f32[1,256], index: 4, kind: input, shape index: {}]
  %s5 = inlined_call_operand.hbm [shape: bf16[256,128], index: 5, kind: input, shape index: {}]
  %s6 = inlined_call_operand.vmem [shape: f32[1,128], index: 6, kind: input, shape index: {}]
  %s7 = inlined_call_operand.hbm [shape: f32[2,128], index: 7, kind: output, shape index: {}]
  %s8 = sld [smem:[#allocation0]]
  $region66: #{tpu_custom_call.1} parent=0
    _
  %s10 = ssub.s32 1, %s8
  %s11 = scalar_select 0, %s10, %s8
  $region1: #{tpu_custom_call.1} parent=0
    #allocation3 [shape = 'u8[512]{0}', space=vmem, size = 0x400, scoped, tag = 'input window, operand 0, single buffered']
    #allocation4 [shape = 's32[1]{0}', space=sflag, size = 0x4, scoped, tag = 'scoped memory for tpu_custom_call.1']
    #allocation5 [shape = 's32[1]{0}', space=sflag, size = 0x4, scoped, tag = 'scoped memory for tpu_custom_call.1']
    #allocation6 [shape = 'u8[2048]{0}', space=vmem, size = 0x800, scoped, tag = 'input window, operand 1, single buffered']
    #allocation7 [shape = 's32[1]{0}', space=sflag, size = 0x4, scoped, tag = 'scoped memory for tpu_custom_call.1']
    #allocation8 [shape = 'u8[16384]{0}', space=vmem, size = 0x4000, scoped, tag = 'input window, operand 2, single buffered']
    #allocation9 [shape = 'u8[16384]{0}', space=vmem, size = 0x4000, scoped, tag = 'input window, operand 3, single buffered']
    #allocation10 [shape = 's32[1]{0}', space=sflag, size = 0x4, scoped, tag = 'scoped memory for tpu_custom_call.1']
    #allocation11 [shape = 'u8[65536]{0}', space=vmem, size = 0x10000, scoped, tag = 'input window, operand 5, single buffered']
    #allocation12 [shape = 'u8[1024]{0}', space=vmem, size = 0x400, scoped, tag = 'output window, operand 0, single buffered']
    %12 = vsyncpa [#allocation4], 0
    %13 = vsyncpa [#allocation7], 0
    %14 = vsyncpa [#allocation10], 0
    %15 = vsyncpa [#allocation5], 0
    // Predicated region
    $region2: #{tpu_custom_call.1} parent=1 // pred_check
      _
    $region3: #{tpu_custom_call.1} parent=1 // pred_check_branch
      %17 = sbr.rel (0) target = $region5
    $region4: #{tpu_custom_call.1} parent=1 // pred_region
      %19 = vsyncadd [#allocation4], 0
      %s21 = sshll.u32 %s0, 4
      %s22 = int_to_ptr.hbm [resolvable:$true] %s21
      %s23 = sshll.u32 [#allocation3], 4
      %s24 = int_to_ptr.vmem [resolvable:$true] %s23
      %26 = dma.hbm_to_vmem [thread:$0]  %s22, 16, %s24, [#allocation4]
    $region5: #{tpu_custom_call.1} parent=1 // pred_fallthru
      _
    // Predicated region
    $region6: #{tpu_custom_call.1} parent=1 // pred_check
      _
    $region7: #{tpu_custom_call.1} parent=1 // pred_check_branch
      %28 = sbr.rel (0) target = $region9
    $region8: #{tpu_custom_call.1} parent=1 // pred_region
      %30 = vsyncadd [#allocation7], 0
      %s31 = sshll.u32 %s1, 4
      %s32 = int_to_ptr.hbm [resolvable:$true] %s31
      %s33 = sshll.u32 [#allocation6], 4
      %s34 = int_to_ptr.vmem [resolvable:$true] %s33
      %39 = dma.hbm_to_vmem [thread:$0]  %s32, 64, %s34, [#allocation7], 32, 32, 2
    $region9: #{tpu_custom_call.1} parent=1 // pred_fallthru
      _
    // Predicated region
    $region10: #{tpu_custom_call.1} parent=1 // pred_check
      _
    $region11: #{tpu_custom_call.1} parent=1 // pred_check_branch
      %41 = sbr.rel (0) target = $region13
    $region12: #{tpu_custom_call.1} parent=1 // pred_region
      %43 = vsyncadd [#allocation7], 0
      %s44 = sshll.u32 %s2, 4
      %s45 = int_to_ptr.hbm [resolvable:$true] %s44
      %s46 = sshll.u32 [#allocation8], 4
      %s47 = int_to_ptr.vmem [resolvable:$true] %s46
      %52 = dma.hbm_to_vmem [thread:$0]  %s45, 512, %s47, [#allocation7], 128, 128, 8
    $region13: #{tpu_custom_call.1} parent=1 // pred_fallthru
      _
    // Predicated region
    $region14: #{tpu_custom_call.1} parent=1 // pred_check
      _
    $region15: #{tpu_custom_call.1} parent=1 // pred_check_branch
      %54 = sbr.rel (0) target = $region17
    $region16: #{tpu_custom_call.1} parent=1 // pred_region
      %56 = vsyncadd [#allocation10], 0
      %s57 = sshll.u32 %s3, 4
      %s58 = int_to_ptr.hbm [resolvable:$true] %s57
      %s59 = sshll.u32 [#allocation9], 4
      %s60 = int_to_ptr.vmem [resolvable:$true] %s59
      %65 = dma.hbm_to_vmem [thread:$0]  %s58, 512, %s60, [#allocation10], 128, 128, 8
    $region17: #{tpu_custom_call.1} parent=1 // pred_fallthru
      _
    // Predicated region
    $region18: #{tpu_custom_call.1} parent=1 // pred_check
      _
    $region19: #{tpu_custom_call.1} parent=1 // pred_check_branch
      %67 = sbr.rel (0) target = $region21
    $region20: #{tpu_custom_call.1} parent=1 // pred_region
      _
    $region21: #{tpu_custom_call.1} parent=1 // pred_fallthru
      _
    // Predicated region
    $region22: #{tpu_custom_call.1} parent=1 // pred_check
      _
    $region23: #{tpu_custom_call.1} parent=1 // pred_check_branch
      %69 = sbr.rel (0) target = $region25
    $region24: #{tpu_custom_call.1} parent=1 // pred_region
      %71 = vsyncadd [#allocation10], 0
      %s72 = sshll.u32 %s5, 4
      %s73 = int_to_ptr.hbm [resolvable:$true] %s72
      %s74 = sshll.u32 [#allocation11], 4
      %s75 = int_to_ptr.vmem [resolvable:$true] %s74
      %80 = dma.hbm_to_vmem [thread:$0]  %s73, 2048, %s75, [#allocation10], 64, 64, 4
    $region25: #{tpu_custom_call.1} parent=1 // pred_fallthru
      _
    // Predicated region
    $region26: #{tpu_custom_call.1} parent=1 // pred_check
      _
    $region27: #{tpu_custom_call.1} parent=1 // pred_check_branch
      %82 = sbr.rel (0) target = $region29
    $region28: #{tpu_custom_call.1} parent=1 // pred_region
      _
    $region29: #{tpu_custom_call.1} parent=1 // pred_fallthru
      _
    // Predicated region
    $region30: #{tpu_custom_call.1} parent=1 // pred_check
      _
    $region31: #{tpu_custom_call.1} parent=1 // pred_check_branch
      %84 = sbr.rel (0) target = $region33
    $region32: #{tpu_custom_call.1} parent=1 // pred_region
      %86 = dma.done [#allocation4], 16
    $region33: #{tpu_custom_call.1} parent=1 // pred_fallthru
      _
    // Predicated region
    $region34: #{tpu_custom_call.1} parent=1 // pred_check
      _
    $region35: #{tpu_custom_call.1} parent=1 // pred_check_branch
      %88 = sbr.rel (0) target = $region37
    $region36: #{tpu_custom_call.1} parent=1 // pred_region
      %90 = dma.done [#allocation7], 64
    $region37: #{tpu_custom_call.1} parent=1 // pred_fallthru
      _
    // Predicated region
    $region38: #{tpu_custom_call.1} parent=1 // pred_check
      _
    $region39: #{tpu_custom_call.1} parent=1 // pred_check_branch
      %92 = sbr.rel (0) target = $region41
    $region40: #{tpu_custom_call.1} parent=1 // pred_region
      %94 = dma.done [#allocation7], 512
    $region41: #{tpu_custom_call.1} parent=1 // pred_fallthru
      _
    // Predicated region
    $region42: #{tpu_custom_call.1} parent=1 // pred_check
      _
    $region43: #{tpu_custom_call.1} parent=1 // pred_check_branch
      %96 = sbr.rel (0) target = $region45
    $region44: #{tpu_custom_call.1} parent=1 // pred_region
      %98 = dma.done [#allocation10], 512
    $region45: #{tpu_custom_call.1} parent=1 // pred_fallthru
      _
    // Predicated region
    $region46: #{tpu_custom_call.1} parent=1 // pred_check
      _
    $region47: #{tpu_custom_call.1} parent=1 // pred_check_branch
      %100 = sbr.rel (0) target = $region49
    $region48: #{tpu_custom_call.1} parent=1 // pred_region
      %102 = dma.done [#allocation10], 2048
    $region49: #{tpu_custom_call.1} parent=1 // pred_fallthru
      _
    %p104 = scmp.eq.s32.totalorder 0, 0
    // Predicated region
    $region50: #{tpu_custom_call.1} parent=1 // pred_check
      %p105 = pneg %p104
    $region51: #{tpu_custom_call.1} parent=1 // pred_check_branch
      %107 = sbr.rel (%p105) target = $region53
    $region52: #{tpu_custom_call.1} parent=1 // pred_region
      %vm108 = vcmask 254976
      %109 = vst.msk [vmem:[#allocation2] sm:$0x3] %vm108, 0.0
    $region53: #{tpu_custom_call.1} parent=1 // pred_fallthru
      _
    %v110 = vld [vmem:[#allocation6] sm:$0x3]
    %v111 = vld [vmem:[#allocation6 + $0x2] sm:$0x3]
    %v112 = vunpack.c.l.bf16 %v110
    %v113 = vunpack.c.l.bf16 %v111
    %v114 = vld [vmem:[#allocation2] sm:$0x3]
    %vm115 = vcmask 257024
    %v116 = vsel %vm115, %v112, 0.0
    %v117 = vrot.slane %v116, 4
    %v118 = vadd.f32 %v116, %v117
    %v119 = vrot.slane %v118, 2
    %v120 = vadd.f32 %v118, %v119
    %v121 = vrot.slane %v120, 1
    %v122 = vadd.f32 %v120, %v121
    %v123 = vsel %vm115, %v113, 0.0
    %v124 = vrot.slane %v123, 4
    %v125 = vadd.f32 %v123, %v124
    %v126 = vrot.slane %v125, 2
    %v127 = vadd.f32 %v125, %v126
    %v128 = vrot.slane %v127, 1
    %v129 = vadd.f32 %v127, %v128
    %vm132 = vcmask 1041409
    %v133 = vsel %vm132, %v129, %v122
    %v135 = vadd.f32 %v114, %v133
    %vm136 = vcmask 254976
    %137 = vst.msk [vmem:[#allocation2] sm:$0x3] %vm136, %v135
    // Predicated region
    $region54: #{tpu_custom_call.1} parent=1 // pred_check
      %p138 = pneg %p104
    $region55: #{tpu_custom_call.1} parent=1 // pred_check_branch
      %140 = sbr.rel (%p138) target = $region57
    $region56: #{tpu_custom_call.1} parent=1 // pred_region
      %v141 = vld [vmem:[#allocation3] sm:$0x1]
      %v142 = vld [vmem:[#allocation2] sm:$0x3]
      %v143 = vmul.f32 %v142, 0.25
      %v144 = vpack.c.bf16 %v143, %v143
      %v145 = vld [vmem:[#allocation8] sm:$0xff]
      %v146 = vld [vmem:[#allocation8 + $0x8] sm:$0xff]
      %v147 = vld [vmem:[#allocation8 + $0x10] sm:$0xff]
      %v148 = vld [vmem:[#allocation8 + $0x18] sm:$0xff]
      %v149 = vld [vmem:[#allocation9] sm:$0xff]
      %v150 = vld [vmem:[#allocation9 + $0x8] sm:$0xff]
      %v151 = vld [vmem:[#allocation9 + $0x10] sm:$0xff]
      %v152 = vld [vmem:[#allocation9 + $0x18] sm:$0xff]
      %v157 = vunpack.c.l.b16 %v149
      %v158 = vunpack.c.h.b16 %v149
      %v159 = vunpack.c.l.b16 %v150
      %v160 = vunpack.c.h.b16 %v150
      %v161 = vunpack.c.l.b16 %v151
      %v162 = vunpack.c.h.b16 %v151
      %v163 = vunpack.c.l.b16 %v152
      %v164 = vunpack.c.h.b16 %v152
      %v165 = vpack.c.b16 %v159, %v157
      %v166 = vpack.c.b16 %v160, %v158
      %v167 = vpack.c.b16 %v163, %v161
      %v168 = vpack.c.b16 %v164, %v162
      %vm173 = vcmask 261120
      %v175 = vsel %vm173, %v144, 0
      %177 = vmatpush.bf16.msra.mxu0 0
      %178 = vmatpush.bf16.msra.mxu0 0
      %179 = vmatpush.bf16.msra.mxu0 0
      %180 = vmatpush.bf16.msra.mxu0 0
      %181 = vmatpush.bf16.msra.mxu0 0
      %182 = vmatpush.bf16.msra.mxu0 0
      %183 = vmatpush.bf16.msra.mxu0 %v167
      %184 = vmatpush.bf16.msra.mxu0 %v165
      %185 = vmatmul.bf16.gmra.mxu0 %v175
      %v186 = vpop.f32.mrf.mxu0
      %v187 = vadd.f32 0.0, %v186
      %v188 = vpop.f32.mrf.mxu0
      %189 = vdwg.mxu0
      %190 = vmatpush.bf16.msra.mxu0 0
      %191 = vmatpush.bf16.msra.mxu0 0
      %192 = vmatpush.bf16.msra.mxu0 0
      %193 = vmatpush.bf16.msra.mxu0 0
      %194 = vmatpush.bf16.msra.mxu0 0
      %195 = vmatpush.bf16.msra.mxu0 0
      %196 = vmatpush.bf16.msra.mxu0 %v168
      %197 = vmatpush.bf16.msra.mxu0 %v166
      %198 = vmatmul.bf16.gmra.mxu0 %v175
      %v199 = vpop.f32.mrf.mxu0
      %v200 = vadd.f32 0.0, %v199
      %v201 = vpop.f32.mrf.mxu0
      %202 = vdwg.mxu0
      %v207 = vunpack.c.l.b16 %v145
      %v208 = vunpack.c.h.b16 %v145
      %v209 = vunpack.c.l.b16 %v146
      %v210 = vunpack.c.h.b16 %v146
      %v211 = vunpack.c.l.b16 %v147
      %v212 = vunpack.c.h.b16 %v147
      %v213 = vunpack.c.l.b16 %v148
      %v214 = vunpack.c.h.b16 %v148
      %v215 = vpack.c.b16 %v209, %v207
      %v216 = vpack.c.b16 %v210, %v208
      %v217 = vpack.c.b16 %v213, %v211
      %v218 = vpack.c.b16 %v214, %v212
      %v224 = vsel %vm173, %v141, 0
      %226 = vmatpush.bf16.msra.mxu0 0
      %227 = vmatpush.bf16.msra.mxu0 0
      %228 = vmatpush.bf16.msra.mxu0 0
      %229 = vmatpush.bf16.msra.mxu0 0
      %230 = vmatpush.bf16.msra.mxu0 0
      %231 = vmatpush.bf16.msra.mxu0 0
      %232 = vmatpush.bf16.msra.mxu0 %v217
      %233 = vmatpush.bf16.msra.mxu0 %v215
      %234 = vmatmul.bf16.gmra.mxu0 %v224
      %v235 = vpop.f32.mrf.mxu0
      %v236 = vadd.f32 %v187, %v235
      %v237 = vpop.f32.mrf.mxu0
      %238 = vdwg.mxu0
      %239 = vmatpush.bf16.msra.mxu0 0
      %240 = vmatpush.bf16.msra.mxu0 0
      %241 = vmatpush.bf16.msra.mxu0 0
      %242 = vmatpush.bf16.msra.mxu0 0
      %243 = vmatpush.bf16.msra.mxu0 0
      %244 = vmatpush.bf16.msra.mxu0 0
      %245 = vmatpush.bf16.msra.mxu0 %v218
      %246 = vmatpush.bf16.msra.mxu0 %v216
      %247 = vmatmul.bf16.gmra.mxu0 %v224
      %v248 = vpop.f32.mrf.mxu0
      %v249 = vadd.f32 %v200, %v248
      %v250 = vpop.f32.mrf.mxu0
      %251 = vdwg.mxu0
      %v252 = vld [vmem:[%s4] sm:$0x3]
      %v254 = vperm.slane %v252, 0
      %v255 = vperm.slane %v252, 1
      %v258 = vadd.f32 %v236, %v254
      %v259 = vadd.f32 %v249, %v255
      %v260 = vmax.f32 %v258, 0.0
      %v261 = vmax.f32 %v259, 0.0
      %v262 = vpack.c.bf16 %v260, %v260
      %v263 = vpack.c.bf16 %v261, %v261
      %v264 = vld [vmem:[#allocation11] sm:$0xf]
      %v265 = vld [vmem:[#allocation11 + $0x4] sm:$0xf]
      %v266 = vld [vmem:[#allocation11 + $0x8] sm:$0xf]
      %v267 = vld [vmem:[#allocation11 + $0xc] sm:$0xf]
      %v268 = vld [vmem:[#allocation11 + $0x10] sm:$0xf]
      %v269 = vld [vmem:[#allocation11 + $0x14] sm:$0xf]
      %v270 = vld [vmem:[#allocation11 + $0x18] sm:$0xf]
      %v271 = vld [vmem:[#allocation11 + $0x1c] sm:$0xf]
      %v272 = vld [vmem:[#allocation11 + $0x20] sm:$0xf]
      %v273 = vld [vmem:[#allocation11 + $0x24] sm:$0xf]
      %v274 = vld [vmem:[#allocation11 + $0x28] sm:$0xf]
      %v275 = vld [vmem:[#allocation11 + $0x2c] sm:$0xf]
      %v276 = vld [vmem:[#allocation11 + $0x30] sm:$0xf]
      %v277 = vld [vmem:[#allocation11 + $0x34] sm:$0xf]
      %v278 = vld [vmem:[#allocation11 + $0x38] sm:$0xf]
      %v279 = vld [vmem:[#allocation11 + $0x3c] sm:$0xf]
      %v280 = vld [vmem:[#allocation11 + $0x40] sm:$0xf]
      %v281 = vld [vmem:[#allocation11 + $0x44] sm:$0xf]
      %v282 = vld [vmem:[#allocation11 + $0x48] sm:$0xf]
      %v283 = vld [vmem:[#allocation11 + $0x4c] sm:$0xf]
      %v284 = vld [vmem:[#allocation11 + $0x50] sm:$0xf]
      %v285 = vld [vmem:[#allocation11 + $0x54] sm:$0xf]
      %v286 = vld [vmem:[#allocation11 + $0x58] sm:$0xf]
      %v287 = vld [vmem:[#allocation11 + $0x5c] sm:$0xf]
      %v288 = vld [vmem:[#allocation11 + $0x60] sm:$0xf]
      %v289 = vld [vmem:[#allocation11 + $0x64] sm:$0xf]
      %v290 = vld [vmem:[#allocation11 + $0x68] sm:$0xf]
      %v291 = vld [vmem:[#allocation11 + $0x6c] sm:$0xf]
      %v292 = vld [vmem:[#allocation11 + $0x70] sm:$0xf]
      %v293 = vld [vmem:[#allocation11 + $0x74] sm:$0xf]
      %v294 = vld [vmem:[#allocation11 + $0x78] sm:$0xf]
      %v295 = vld [vmem:[#allocation11 + $0x7c] sm:$0xf]
      %v296 = vld [vmem:[%s6] sm:$0x1]
      %v298 = vperm.slane %v296, 0
      %v332 = vunpack.c.l.b16 %v264
      %v333 = vunpack.c.l.b16 %v265
      %v334 = vunpack.c.l.b16 %v266
      %v335 = vunpack.c.l.b16 %v267
      %v336 = vunpack.c.l.b16 %v268
      %v337 = vunpack.c.l.b16 %v269
      %v338 = vunpack.c.l.b16 %v270
      %v339 = vunpack.c.l.b16 %v271
      %v340 = vunpack.c.l.b16 %v272
      %v341 = vunpack.c.l.b16 %v273
      %v342 = vunpack.c.l.b16 %v274
      %v343 = vunpack.c.l.b16 %v275
      %v344 = vunpack.c.l.b16 %v276
      %v345 = vunpack.c.l.b16 %v277
      %v346 = vunpack.c.l.b16 %v278
      %v347 = vunpack.c.l.b16 %v279
      %v348 = vunpack.c.l.b16 %v280
      %v349 = vunpack.c.l.b16 %v281
      %v350 = vunpack.c.l.b16 %v282
      %v351 = vunpack.c.l.b16 %v283
      %v352 = vunpack.c.l.b16 %v284
      %v353 = vunpack.c.l.b16 %v285
      %v354 = vunpack.c.l.b16 %v286
      %v355 = vunpack.c.l.b16 %v287
      %v356 = vunpack.c.l.b16 %v288
      %v357 = vunpack.c.l.b16 %v289
      %v358 = vunpack.c.l.b16 %v290
      %v359 = vunpack.c.l.b16 %v291
      %v360 = vunpack.c.l.b16 %v292
      %v361 = vunpack.c.l.b16 %v293
      %v362 = vunpack.c.l.b16 %v294
      %v363 = vunpack.c.l.b16 %v295
      %v364 = vpack.c.b16 %v333, %v332
      %v365 = vpack.c.b16 %v335, %v334
      %v366 = vpack.c.b16 %v337, %v336
      %v367 = vpack.c.b16 %v339, %v338
      %v368 = vpack.c.b16 %v341, %v340
      %v369 = vpack.c.b16 %v343, %v342
      %v370 = vpack.c.b16 %v345, %v344
      %v371 = vpack.c.b16 %v347, %v346
      %v372 = vpack.c.b16 %v349, %v348
      %v373 = vpack.c.b16 %v351, %v350
      %v374 = vpack.c.b16 %v353, %v352
      %v375 = vpack.c.b16 %v355, %v354
      %v376 = vpack.c.b16 %v357, %v356
      %v377 = vpack.c.b16 %v359, %v358
      %v378 = vpack.c.b16 %v361, %v360
      %v379 = vpack.c.b16 %v363, %v362
      %396 = vmatpush.bf16.msra.mxu0 %v371
      %397 = vmatpush.bf16.msra.mxu0 %v370
      %398 = vmatpush.bf16.msra.mxu0 %v369
      %399 = vmatpush.bf16.msra.mxu0 %v368
      %400 = vmatpush.bf16.msra.mxu0 %v367
      %401 = vmatpush.bf16.msra.mxu0 %v366
      %402 = vmatpush.bf16.msra.mxu0 %v365
      %403 = vmatpush.bf16.msra.mxu0 %v364
      %404 = vmatmul.bf16.gmra.mxu0 %v262
      %v405 = vpop.f32.mrf.mxu0
      %v406 = vadd.f32 %v298, %v405
      %v407 = vpop.f32.mrf.mxu0
      %408 = vdwg.mxu0
      %409 = vmatpush.bf16.msra.mxu0 %v379
      %410 = vmatpush.bf16.msra.mxu0 %v378
      %411 = vmatpush.bf16.msra.mxu0 %v377
      %412 = vmatpush.bf16.msra.mxu0 %v376
      %413 = vmatpush.bf16.msra.mxu0 %v375
      %414 = vmatpush.bf16.msra.mxu0 %v374
      %415 = vmatpush.bf16.msra.mxu0 %v373
      %416 = vmatpush.bf16.msra.mxu0 %v372
      %417 = vmatmul.bf16.gmra.mxu0 %v263
      %v418 = vpop.f32.mrf.mxu0
      %v419 = vadd.f32 %v406, %v418
      %v420 = vpop.f32.mrf.mxu0
      %421 = vdwg.mxu0
      %422 = vst [vmem:[#allocation12] sm:$0x3] %v419
    $region57: #{tpu_custom_call.1} parent=1 // pred_fallthru
      _
    // Predicated region
    $region58: #{tpu_custom_call.1} parent=1 // pred_check
      _
    $region59: #{tpu_custom_call.1} parent=1 // pred_check_branch
      %424 = sbr.rel (0) target = $region61
    $region60: #{tpu_custom_call.1} parent=1 // pred_region
      %426 = vsyncadd [#allocation5], 0
      %s428 = sshll.u32 [#allocation12], 4
      %s429 = int_to_ptr.vmem [resolvable:$true] %s428
      %s430 = sshll.u32 %s7, 4
      %s431 = int_to_ptr.hbm [resolvable:$true] %s430
      %433 = dma.vmem_to_hbm [thread:$0]  %s429, 32, %s431, [#allocation5]
    $region61: #{tpu_custom_call.1} parent=1 // pred_fallthru
      _
    // Predicated region
    $region62: #{tpu_custom_call.1} parent=1 // pred_check
      _
    $region63: #{tpu_custom_call.1} parent=1 // pred_check_branch
      %435 = sbr.rel (0) target = $region65
    $region64: #{tpu_custom_call.1} parent=1 // pred_region
      %437 = dma.done [#allocation5], 32
    $region65: #{tpu_custom_call.1} parent=1 // pred_fallthru
      _
    %438 = vsyncpa [#allocation4], 1
    %439 = vsyncpa [#allocation7], 1
    %440 = vsyncpa [#allocation10], 1
    %441 = vsyncpa [#allocation5], 1

</llo_original>
